<compile_context>
chip_gen: v5e
topology: v5e:2x2
jax: 0.10.0
libtpu: 0.0.40
codegen_flags: <defaults>
</compile_context>

<pallas_src>
import functools

import jax
import jax.numpy as jnp
import numpy as np
from jax.experimental import pallas as pl
from jax.experimental.pallas import tpu as pltpu

LANE = 128


def _round_up(x, m):
    return (x + m - 1) // m * m


def conv_stats_kernel(p_ref, w_ref, stats_ref):
    """Pass 1: conv tile + per-channel sum / sum-of-squares accumulation.

    p_ref    : (TM, K_pad)        im2col patch tile
    w_ref    : (K_pad, Cout_pad)  folded conv weights
    stats_ref: (2, Cout_pad)      resident accumulator [sum; sum_sq]
    """
    @pl.when(pl.program_id(0) == 0)
    def _():
        stats_ref[...] = jnp.zeros_like(stats_ref)

    conv = jnp.dot(p_ref[...], w_ref[...], preferred_element_type=jnp.float32)
    s = jnp.sum(conv, axis=0, keepdims=True)            # (1, Cout_pad)
    sq = jnp.sum(conv * conv, axis=0, keepdims=True)    # (1, Cout_pad)
    stats_ref[...] += jnp.concatenate([s, sq], axis=0)


def conv_bn_relu_kernel(p_ref, w_ref, stats_ref, gamma_ref, beta_ref, o_ref, *,
                        count, eps):
    """Pass 2: conv tile (recomputed) + folded BatchNorm scale/shift + ReLU."""
    conv = jnp.dot(p_ref[...], w_ref[...], preferred_element_type=jnp.float32)

    st = stats_ref[...]                                  # (2, Cout_pad) f32
    inv_n = 1.0 / count
    mean = st[0:1, :] * inv_n
    var = jnp.maximum(st[1:2, :] * inv_n - mean * mean, 0.0)   # biased batch variance
    inv_std = jax.lax.rsqrt(var + eps)

    scale = gamma_ref[...] * inv_std                     # (1, Cout_pad)
    shift = beta_ref[...] - mean * scale                 # (1, Cout_pad)

    o_ref[...] = jnp.maximum(conv * scale + shift, 0.0).astype(o_ref.dtype)


def basic_block_forward(x_nchw, w_oihw, gamma, beta, eps=1e-5, row_tile=256):
    """PyTorch-semantics BasicBlock forward.

    x_nchw: (N, Cin, H, W), w_oihw: (Cout, Cin, KH, KW), gamma/beta: (Cout,)
    """
    N, Cin, H, W = x_nchw.shape
    Cout, _, KH, KW = w_oihw.shape
    ph, pw = (KH - 1) // 2, (KW - 1) // 2

    M = N * H * W
    K = KH * KW * Cin
    K_pad = _round_up(K, LANE)
    Cout_pad = _round_up(Cout, LANE)
    TM = min(row_tile, _round_up(M, 8))
    M_pad = _round_up(M, TM)
    n_tiles = M_pad // TM

    # ---- glue (pure layout): NCHW->NHWC, halo pad, im2col, lane/row padding ----
    x_nhwc = jnp.transpose(x_nchw, (0, 2, 3, 1))
    x_sp = jnp.pad(x_nhwc, ((0, 0), (ph, ph), (pw, pw), (0, 0)))
    cols = [x_sp[:, kh:kh + H, kw:kw + W, :] for kh in range(KH) for kw in range(KW)]
    patches = jnp.concatenate(cols, axis=-1).reshape(M, K)
    patches = jnp.pad(patches, ((0, M_pad - M), (0, K_pad - K)))

    w_mat = jnp.transpose(w_oihw, (2, 3, 1, 0)).reshape(K, Cout).astype(x_nchw.dtype)
    w_mat = jnp.pad(w_mat, ((0, K_pad - K), (0, Cout_pad - Cout)))

    gamma_p = jnp.pad(gamma.astype(jnp.float32).reshape(1, Cout),
                      ((0, 0), (0, Cout_pad - Cout)), constant_values=1.0)
    beta_p = jnp.pad(beta.astype(jnp.float32).reshape(1, Cout),
                     ((0, 0), (0, Cout_pad - Cout)))

    p_spec = pl.BlockSpec((TM, K_pad), lambda i: (i, 0))
    w_spec = pl.BlockSpec((K_pad, Cout_pad), lambda i: (0, 0))
    stats_spec = pl.BlockSpec((2, Cout_pad), lambda i: (0, 0))
    vec_spec = pl.BlockSpec((1, Cout_pad), lambda i: (0, 0))
    out_spec = pl.BlockSpec((TM, Cout_pad), lambda i: (i, 0))

    vmem_limit = 32 * 1024 * 1024  # explicit; safe on v5e (16 MiB default) and v7x (64 MiB VMEM)

    # Pass 1: conv + per-channel sum / sum-of-squares (reduction axis -> "arbitrary").
    stats = pl.pallas_call(
        conv_stats_kernel,
        out_shape=jax.ShapeDtypeStruct((2, Cout_pad), jnp.float32),
        grid=(n_tiles,),
        in_specs=[p_spec, w_spec],
        out_specs=stats_spec,
        compiler_params=pltpu.CompilerParams(
            dimension_semantics=("arbitrary",), vmem_limit_bytes=vmem_limit),
    )(patches, w_mat)

    # Pass 2: conv (recomputed) + folded BN + ReLU ("parallel" -> both TCs on v7x).
    out_flat = pl.pallas_call(
        functools.partial(conv_bn_relu_kernel, count=float(M), eps=float(eps)),
        out_shape=jax.ShapeDtypeStruct((M_pad, Cout_pad), x_nchw.dtype),
        grid=(n_tiles,),
        in_specs=[p_spec, w_spec, stats_spec, vec_spec, vec_spec],
        out_specs=out_spec,
        compiler_params=pltpu.CompilerParams(
            dimension_semantics=("parallel",), vmem_limit_bytes=vmem_limit),
    )(patches, w_mat, stats, gamma_p, beta_p)

    out = out_flat[:M, :Cout].reshape(N, H, W, Cout)
    return jnp.transpose(out, (0, 3, 1, 2))  # back to NCHW


def basic_block_reference(x_nchw, w_oihw, gamma, beta, eps=1e-5):
    """Pure-JAX reference matching nn.Conv2d + nn.BatchNorm2d(train) + ReLU."""
    p = (w_oihw.shape[2] - 1) // 2
    conv = jax.lax.conv_general_dilated(
        x_nchw, w_oihw, window_strides=(1, 1),
        padding=[(p, p), (p, p)],
        dimension_numbers=("NCHW", "OIHW", "NCHW"))
    mean = conv.mean(axis=(0, 2, 3), keepdims=True)
    var = ((conv - mean) ** 2).mean(axis=(0, 2, 3), keepdims=True)
    y = (conv - mean) * jax.lax.rsqrt(var + eps)
    y = y * gamma.reshape(1, -1, 1, 1) + beta.reshape(1, -1, 1, 1)
    return jnp.maximum(y, 0.0)


if __name__ == "__main__":
    # Small shapes consistent with BasicBlock(in_channels=4, out_channels=8, filter_size=3).
    N, Cin, H, W = 2, 4, 16, 16
    Cout, FS = 8, 3

    key = jax.random.PRNGKey(0)
    kx, kw = jax.random.split(key)
    x = jax.random.normal(kx, (N, Cin, H, W), dtype=jnp.float32)
    fan_in = Cin * FS * FS
    w = jax.random.normal(kw, (Cout, Cin, FS, FS), dtype=jnp.float32) / np.sqrt(fan_in)
    gamma = jnp.ones((Cout,), jnp.float32)   # PyTorch BN init
    beta = jnp.zeros((Cout,), jnp.float32)

    out = basic_block_forward(x, w, gamma, beta)
    out = jax.block_until_ready(out)

    ref = basic_block_reference(x, w, gamma, beta)
    np.testing.assert_allclose(np.asarray(out), np.asarray(ref), atol=1e-4, rtol=1e-4)

    print("KERNEL_OK")
</pallas_src>

<mosaic_0001>
module attributes {stable_mosaic.version = 11 : i64} {
  func.func @conv_stats_kernel(%arg0: i32, %arg1: memref<256x128xf32, #tpu.memory_space<vmem>>, %arg2: memref<128x128xf32, #tpu.memory_space<vmem>>, %arg3: memref<2x128xf32, #tpu.memory_space<vmem>>) attributes {dimension_semantics = [#tpu.dimension_semantics<arbitrary>], iteration_bounds = array<i64: 2>, scalar_prefetch = 0 : i64, scratch_operands = 0 : i64, tpu.core_type = #tpu.core_type<tc>, window_params = [{transform_indices = @transform_0, window_bounds = array<i64: 256, 128>}, {pipeline_mode = #tpu.pipeline_mode<synchronous>, transform_indices = @transform_1, window_bounds = array<i64: 128, 128>}, {pipeline_mode = #tpu.pipeline_mode<synchronous>, transform_indices = @transform_2, window_bounds = array<i64: 2, 128>}]} {
    %c0_i32 = arith.constant 0 : i32
    %0 = arith.cmpi eq, %arg0, %c0_i32 : i32
    %1 = arith.extui %0 : i1 to i32
    %c0_i32_0 = arith.constant 0 : i32
    %2 = arith.cmpi ne, %1, %c0_i32_0 : i32
    scf.if %2 {
      %cst_10 = arith.constant 0.000000e+00 : f32
      %15 = vector.broadcast %cst_10 : f32 to vector<2x128xf32>
      %c0_11 = arith.constant 0 : index
      %c0_12 = arith.constant 0 : index
      %16 = vector.load %arg3[%c0_11, %c0_12] : memref<2x128xf32, #tpu.memory_space<vmem>>, vector<2x128xf32>
      tpu.vector_store %arg3[%c0_11, %c0_12], %15 {strides = array<i32>} : memref<2x128xf32, #tpu.memory_space<vmem>>, vector<2x128xf32>,
    } else {
    }
    %c0 = arith.constant 0 : index
    %c0_1 = arith.constant 0 : index
    %3 = vector.load %arg1[%c0, %c0_1] : memref<256x128xf32, #tpu.memory_space<vmem>>, vector<256x128xf32>
    %c0_2 = arith.constant 0 : index
    %c0_3 = arith.constant 0 : index
    %4 = vector.load %arg2[%c0_2, %c0_3] : memref<128x128xf32, #tpu.memory_space<vmem>>, vector<128x128xf32>
    %cst = arith.constant dense<0.000000e+00> : vector<256x128xf32>
    %5 = tpu.matmul %3, %4, %cst {dimension_numbers = #tpu.dot_dimension_numbers<[1], [0], [0], [1], [0, 0, 1, 1], [], []>} : vector<256x128xf32>, vector<128x128xf32>, vector<256x128xf32> -> vector<256x128xf32>
    %cst_4 = arith.constant dense<0.000000e+00> : vector<128xf32>
    %6 = vector.multi_reduction <add>, %5, %cst_4 [0] : vector<256x128xf32> to vector<128xf32>
    %7 = vector.shape_cast %6 : vector<128xf32> to vector<1x128xf32>
    %8 = arith.mulf %5, %5 : vector<256x128xf32>
    %cst_5 = arith.constant dense<0.000000e+00> : vector<128xf32>
    %9 = vector.multi_reduction <add>, %8, %cst_5 [0] : vector<256x128xf32> to vector<128xf32>
    %10 = vector.shape_cast %9 : vector<128xf32> to vector<1x128xf32>
    %c0_6 = arith.constant 0 : index
    %c0_7 = arith.constant 0 : index
    %11 = vector.load %arg3[%c0_6, %c0_7] : memref<2x128xf32, #tpu.memory_space<vmem>>, vector<2x128xf32>
    %12 = tpu.concatenate %7, %10 in 0 : vector<1x128xf32>, vector<1x128xf32> -> vector<2x128xf32>
    %13 = arith.addf %11, %12 : vector<2x128xf32>
    %c0_8 = arith.constant 0 : index
    %c0_9 = arith.constant 0 : index
    %14 = vector.load %arg3[%c0_8, %c0_9] : memref<2x128xf32, #tpu.memory_space<vmem>>, vector<2x128xf32>
    tpu.vector_store %arg3[%c0_8, %c0_9], %13 {strides = array<i32>} : memref<2x128xf32, #tpu.memory_space<vmem>>, vector<2x128xf32>,
    return
  }
  func.func @transform_0(%arg0: i32) -> (i32, i32) {
    %c0_i32 = arith.constant 0 : i32
    %c0_i32_0 = arith.constant 0 : i32
    return %arg0, %c0_i32 : i32, i32
  }
  func.func @transform_1(%arg0: i32) -> (i32, i32) {
    %c0_i32 = arith.constant 0 : i32
    %c0_i32_0 = arith.constant 0 : i32
    %c0_i32_1 = arith.constant 0 : i32
    return %c0_i32, %c0_i32_0 : i32, i32
  }
  func.func @transform_2(%arg0: i32) -> (i32, i32) {
    %c0_i32 = arith.constant 0 : i32
    %c0_i32_0 = arith.constant 0 : i32
    %c0_i32_1 = arith.constant 0 : i32
    return %c0_i32, %c0_i32_0 : i32, i32
  }
}

</mosaic_0001>

<llo_original>
// kernel: tpu_custom_call.1
$region0: #{tpu_custom_call.1}
  #allocation0 [shape = 'u32[]', space=smem, size = 0x4, offset = 0x4, fixed_abs, tag = 'smem constant byte address 0x4 - core index']
  #allocation1 [shape = 'u32[72,128]{1,0:T(1,128)}', space=vmem, size = 0x9000, scoped, tag = 'internal scratch']
  %s0 = inlined_call_operand.hbm [shape: f32[512,128], index: 0, kind: input, shape index: {}]
  %s1 = inlined_call_operand.hbm [shape: f32[128,128], index: 1, kind: input, shape index: {}]
  %s2 = inlined_call_operand.hbm [shape: f32[2,128], index: 2, kind: output, shape index: {}]
  %s3 = sld [smem:[#allocation0]]
  $region53: #{tpu_custom_call.1} parent=0
    _
  %s5 = ssub.s32 1, %s3
  %s6 = scalar_select 0, %s5, %s3
  $region1: #{tpu_custom_call.1} parent=0
    #allocation2 [shape = 'u8[262144]{0}', space=vmem, size = 0x40000, scoped, tag = 'input window, operand 0']
    #allocation3 [shape = 's32[2]{0}', space=sflag, size = 0x8, scoped, tag = 'scoped memory for tpu_custom_call.1']
    #allocation4 [shape = 's32[2]{0}', space=sflag, size = 0x8, scoped, tag = 'scoped memory for tpu_custom_call.1']
    #allocation5 [shape = 'u8[65536]{0}', space=vmem, size = 0x10000, scoped, tag = 'input window, operand 1, single buffered']
    #allocation6 [shape = 's32[1]{0}', space=sflag, size = 0x4, scoped, tag = 'scoped memory for tpu_custom_call.1']
    #allocation7 [shape = 'u8[1024]{0}', space=vmem, size = 0x400, scoped, tag = 'output window, operand 0, single buffered']
    %7 = vsyncpa [#allocation3], 0
    %s8 = scalar_lea.sflag [#allocation3], 1
    %9 = vsyncpa %s8, 0
    %10 = vsyncpa [#allocation6], 0
    %11 = vsyncpa [#allocation4], 0
    loop: start=0, step=1, limit=4
    $region2: #{tpu_custom_call.1} parent=1 // loop_pre_header
      _
    $region3: #{tpu_custom_call.1} parent=1 // loop_header
      %s13 = sphi 0, %s17
      %p14 = scmp.ge.s32.totalorder %s13, 4
      %s23 = sphi 0, %s25
      %s26 = sphi 0, %s23
      %s27 = sphi 0, %s26
      %s43 = sphi 0, %s27
      %s47 = sphi 0, %s47
      %s49 = sphi 0, %s47
      %s50 = sphi 0, %s49
      %s64 = sphi 0, %s50
      %s68 = sphi 0, %s68
      %s70 = sphi 0, %s68
      %s71 = sphi 0, %s70
      %s85 = sphi 0, %s71
    $region4: #{tpu_custom_call.1} parent=1 // loop_header_branch
      %16 = sbr.rel (%p14) target = $region8
    $region5: #{tpu_custom_call.1} parent=1 // loop_body
      %s18 = ssub.s32 %s13, 1
      %s19 = ssub.s32 %s13, 2
      %s20 = sadd.s32 %s13, 1
      %s21 = ssub.s32 %s13, %s20
      %p22 = scmp.eq.s32.totalorder %s21, 0
      %s24 = sadd.s32 %s23, 1
      %s25 = scalar_select %p22, %s23, %s24
      %p28 = pneg %p22
      %p29 = scmp.eq.s32.totalorder %s13, 1
      %p30 = por %p28, %p29
      %p31 = scmp.ne.s32.totalorder %s23, %s26
      %p32 = scmp.eq.s32.totalorder %s13, 0
      %p33 = por %p31, %p32
      %p34 = scmp.ne.s32.totalorder %s23, %s26
      %p35 = scmp.eq.s32.totalorder %s18, 1
      %p36 = por %p34, %p35
      %p37 = scmp.ne.s32.totalorder %s26, %s27
      %p38 = scmp.eq.s32.totalorder %s18, 0
      %p39 = por %p37, %p38
      %p40 = scmp.ne.s32.totalorder %s26, %s27
      %p41 = scmp.eq.s32.totalorder %s19, 1
      %p42 = por %p40, %p41
      %p44 = scmp.ne.s32.totalorder %s27, %s43
      %p45 = scmp.eq.s32.totalorder %s19, 0
      %p46 = por %p44, %p45
      %s48 = sadd.s32 %s47, 1
      %p51 = scmp.eq.s32.totalorder %s13, 1
      %p52 = scmp.ne.s32.totalorder %s47, %s49
      %p53 = scmp.eq.s32.totalorder %s13, 0
      %p54 = por %p52, %p53
      %p55 = scmp.ne.s32.totalorder %s47, %s49
      %p56 = scmp.eq.s32.totalorder %s18, 1
      %p57 = por %p55, %p56
      %p58 = scmp.ne.s32.totalorder %s49, %s50
      %p59 = scmp.eq.s32.totalorder %s18, 0
      %p60 = por %p58, %p59
      %p61 = scmp.ne.s32.totalorder %s49, %s50
      %p62 = scmp.eq.s32.totalorder %s19, 1
      %p63 = por %p61, %p62
      %p65 = scmp.ne.s32.totalorder %s50, %s64
      %p66 = scmp.eq.s32.totalorder %s19, 0
      %p67 = por %p65, %p66
      %s69 = sadd.s32 %s68, 1
      %p72 = scmp.eq.s32.totalorder %s13, 1
      %p73 = scmp.ne.s32.totalorder %s68, %s70
      %p74 = scmp.eq.s32.totalorder %s13, 0
      %p75 = por %p73, %p74
      %p76 = scmp.ne.s32.totalorder %s68, %s70
      %p77 = scmp.eq.s32.totalorder %s18, 1
      %p78 = por %p76, %p77
      %p79 = scmp.ne.s32.totalorder %s70, %s71
      %p80 = scmp.eq.s32.totalorder %s18, 0
      %p81 = por %p79, %p80
      %p82 = scmp.ne.s32.totalorder %s70, %s71
      %p83 = scmp.eq.s32.totalorder %s19, 1
      %p84 = por %p82, %p83
      %p86 = scmp.ne.s32.totalorder %s71, %s85
      %p87 = scmp.eq.s32.totalorder %s19, 0
      %p88 = por %p86, %p87
      %p89 = scmp.le.s32.totalorder 1, %s13
      %p90 = scmp.lt.s32.totalorder %s13, 3
      %p91 = pnand %p89, %p90
      %p92 = pneg %p91
      // Predicated region
      $region9: #{tpu_custom_call.1} parent=5 // pred_check
        _
      $region10: #{tpu_custom_call.1} parent=5 // pred_check_branch
        %94 = sbr.rel (%p91) target = $region12
      $region11: #{tpu_custom_call.1} parent=5 // pred_region
        %s95 = ssub.s32 %s13, 1
        // Predicated region
        $region13: #{tpu_custom_call.1} parent=11 // pred_check
          %p96 = pneg %p60
        $region14: #{tpu_custom_call.1} parent=11 // pred_check_branch
          %98 = sbr.rel (%p96) target = $region16
        $region15: #{tpu_custom_call.1} parent=11 // pred_region
          %100 = vsyncadd [#allocation6], 0
          %s101 = sshll.u32 %s1, 4
          %s102 = int_to_ptr.hbm [resolvable:$true] %s101
          %s103 = sshll.u32 [#allocation5], 4
          %s104 = int_to_ptr.vmem [resolvable:$true] %s103
          %109 = dma.hbm_to_vmem [thread:$0]  %s102, 2048, %s104, [#allocation6], 128, 128, 8
        $region16: #{tpu_custom_call.1} parent=11 // pred_fallthru
          _
      $region12: #{tpu_custom_call.1} parent=5 // pred_fallthru
        _
      %p110 = scmp.lt.s32.totalorder %s13, 2
      // Predicated region
      $region17: #{tpu_custom_call.1} parent=5 // pred_check
        %p111 = pneg %p110
      $region18: #{tpu_custom_call.1} parent=5 // pred_check_branch
        %113 = sbr.rel (%p111) target = $region20
      $region19: #{tpu_custom_call.1} parent=5 // pred_region
        // Predicated region
        $region21: #{tpu_custom_call.1} parent=19 // pred_check
          %p114 = pneg %p33
        $region22: #{tpu_custom_call.1} parent=19 // pred_check_branch
          %116 = sbr.rel (%p114) target = $region24
        $region23: #{tpu_custom_call.1} parent=19 // pred_region
          %s117 = sand.u32 %s23, 1
          %s118 = scalar_lea.sflag [#allocation3], %s117
          %s119 = sand.u32 %s23, 1
          %s120 = smul.addr %s119, 256
          %s121 = scalar_lea.vmem [#allocation2], %s120
          %s122 = smul.u32 32, %s13
          %124 = vsyncadd %s118, 0
          %s125 = smul.addr %s122, 8
          %s126 = scalar_lea.hbm %s0, %s125
          %s127 = sshll.u32 %s126, 4
          %s128 = int_to_ptr.hbm [resolvable:$true] %s127
          %s129 = sshll.u32 %s121, 4
          %s130 = int_to_ptr.vmem [resolvable:$true] %s129
          %135 = dma.hbm_to_vmem [thread:$0]  %s128, 4096, %s130, %s118, 128, 128, 8
        $region24: #{tpu_custom_call.1} parent=19 // pred_fallthru
          _
      $region20: #{tpu_custom_call.1} parent=5 // pred_fallthru
        _
      %p136 = scmp.le.s32.totalorder 1, %s13
      %p137 = scmp.lt.s32.totalorder %s13, 3
      %p138 = pnand %p136, %p137
      %p139 = pneg %p138
      // Predicated region
      $region25: #{tpu_custom_call.1} parent=5 // pred_check
        _
      $region26: #{tpu_custom_call.1} parent=5 // pred_check_branch
        %141 = sbr.rel (%p138) target = $region28
      $region27: #{tpu_custom_call.1} parent=5 // pred_region
        %s142 = ssub.s32 %s13, 1
        %s143 = sand.u32 %s26, 1
        %s144 = scalar_lea.sflag [#allocation3], %s143
        %s145 = sand.u32 %s26, 1
        %s146 = smul.addr %s145, 256
        %s147 = scalar_lea.vmem [#allocation2], %s146
        // Predicated region
        $region29: #{tpu_custom_call.1} parent=27 // pred_check
          %p148 = pneg %p39
        $region30: #{tpu_custom_call.1} parent=27 // pred_check_branch
          %150 = sbr.rel (%p148) target = $region32
        $region31: #{tpu_custom_call.1} parent=27 // pred_region
          %152 = dma.done %s144, 4096
        $region32: #{tpu_custom_call.1} parent=27 // pred_fallthru
          _
        // Predicated region
        $region33: #{tpu_custom_call.1} parent=27 // pred_check
          %p153 = pneg %p60
        $region34: #{tpu_custom_call.1} parent=27 // pred_check_branch
          %155 = sbr.rel (%p153) target = $region36
        $region35: #{tpu_custom_call.1} parent=27 // pred_region
          %157 = dma.done [#allocation6], 2048
        $region36: #{tpu_custom_call.1} parent=27 // pred_fallthru
          _
        %s158 = sand.u32 %s26, 1
        %s159 = scalar_lea.sflag [#allocation3], %s158
        %s160 = sand.u32 %s26, 1
        %s161 = smul.addr %s160, 256
        %s162 = scalar_lea.vmem [#allocation2], %s161
        %p163 = pneg %p39
        %p164 = pneg %p36
        %p165 = pneg %p60
        %p166 = pneg %p57
        %p167 = pneg %p81
        %p168 = pneg %p78
        %s169 = smul.u32 32, %s18
        %p170 = scmp.eq.s32.totalorder %s18, 0
        // Predicated region
        $region37: #{tpu_custom_call.1} parent=27 // pred_check
          %p171 = pneg %p170
        $region38: #{tpu_custom_call.1} parent=27 // pred_check_branch
          %173 = sbr.rel (%p171) target = $region40
        $region39: #{tpu_custom_call.1} parent=27 // pred_region
          %174 = vst [vmem:[#allocation7] sm:$0x3] 0.0
        $region40: #{tpu_custom_call.1} parent=27 // pred_fallthru
          _
        %v175 = vld [vmem:[%s147] sm:$0xff]
        %v176 = vld [vmem:[%s147 + $0x8] sm:$0xff]
        %v177 = vld [vmem:[%s147 + $0x10] sm:$0xff]
        %v178 = vld [vmem:[%s147 + $0x18] sm:$0xff]
        %v179 = vld [vmem:[%s147 + $0x20] sm:$0xff]
        %v180 = vld [vmem:[%s147 + $0x28] sm:$0xff]
        %v181 = vld [vmem:[%s147 + $0x30] sm:$0xff]
        %v182 = vld [vmem:[%s147 + $0x38] sm:$0xff]
        %v183 = vld [vmem:[%s147 + $0x40] sm:$0xff]
        %v184 = vld [vmem:[%s147 + $0x48] sm:$0xff]
        %v185 = vld [vmem:[%s147 + $0x50] sm:$0xff]
        %v186 = vld [vmem:[%s147 + $0x58] sm:$0xff]
        %v187 = vld [vmem:[%s147 + $0x60] sm:$0xff]
        %v188 = vld [vmem:[%s147 + $0x68] sm:$0xff]
        %v189 = vld [vmem:[%s147 + $0x70] sm:$0xff]
        %v190 = vld [vmem:[%s147 + $0x78] sm:$0xff]
        %v191 = vld [vmem:[%s147 + $0x80] sm:$0xff]
        %v192 = vld [vmem:[%s147 + $0x88] sm:$0xff]
        %v193 = vld [vmem:[%s147 + $0x90] sm:$0xff]
        %v194 = vld [vmem:[%s147 + $0x98] sm:$0xff]
        %v195 = vld [vmem:[%s147 + $0xa0] sm:$0xff]
        %v196 = vld [vmem:[%s147 + $0xa8] sm:$0xff]
        %v197 = vld [vmem:[%s147 + $0xb0] sm:$0xff]
        %v198 = vld [vmem:[%s147 + $0xb8] sm:$0xff]
        %v199 = vld [vmem:[%s147 + $0xc0] sm:$0xff]
        %v200 = vld [vmem:[%s147 + $0xc8] sm:$0xff]
        %v201 = vld [vmem:[%s147 + $0xd0] sm:$0xff]
        %v202 = vld [vmem:[%s147 + $0xd8] sm:$0xff]
        %v203 = vld [vmem:[%s147 + $0xe0] sm:$0xff]
        %v204 = vld [vmem:[%s147 + $0xe8] sm:$0xff]
        %v205 = vld [vmem:[%s147 + $0xf0] sm:$0xff]
        %v206 = vld [vmem:[%s147 + $0xf8] sm:$0xff]
        %v207 = vld [vmem:[#allocation5] sm:$0xff]
        %v208 = vld [vmem:[#allocation5 + $0x8] sm:$0xff]
        %v209 = vld [vmem:[#allocation5 + $0x10] sm:$0xff]
        %v210 = vld [vmem:[#allocation5 + $0x18] sm:$0xff]
        %v211 = vld [vmem:[#allocation5 + $0x20] sm:$0xff]
        %v212 = vld [vmem:[#allocation5 + $0x28] sm:$0xff]
        %v213 = vld [vmem:[#allocation5 + $0x30] sm:$0xff]
        %v214 = vld [vmem:[#allocation5 + $0x38] sm:$0xff]
        %v215 = vld [vmem:[#allocation5 + $0x40] sm:$0xff]
        %v216 = vld [vmem:[#allocation5 + $0x48] sm:$0xff]
        %v217 = vld [vmem:[#allocation5 + $0x50] sm:$0xff]
        %v218 = vld [vmem:[#allocation5 + $0x58] sm:$0xff]
        %v219 = vld [vmem:[#allocation5 + $0x60] sm:$0xff]
        %v220 = vld [vmem:[#allocation5 + $0x68] sm:$0xff]
        %v221 = vld [vmem:[#allocation5 + $0x70] sm:$0xff]
        %v222 = vld [vmem:[#allocation5 + $0x78] sm:$0xff]
        %223 = vmatpush.msra.mxu0 %v222
        %224 = vmatpush.msra.mxu0 %v221
        %225 = vmatpush.msra.mxu0 %v220
        %226 = vmatpush.msra.mxu0 %v219
        %227 = vmatpush.msra.mxu0 %v218
        %228 = vmatpush.msra.mxu0 %v217
        %229 = vmatpush.msra.mxu0 %v216
        %230 = vmatpush.msra.mxu0 %v215
        %231 = vmatpush.msra.mxu0 %v214
        %232 = vmatpush.msra.mxu0 %v213
        %233 = vmatpush.msra.mxu0 %v212
        %234 = vmatpush.msra.mxu0 %v211
        %235 = vmatpush.msra.mxu0 %v210
        %236 = vmatpush.msra.mxu0 %v209
        %237 = vmatpush.msra.mxu0 %v208
        %238 = vmatpush.msra.mxu0 %v207
        %239 = vmatmul.f32.gmra.mxu0 %v175
        %v240 = vpop.f32.mrf.mxu0
        %v241 = vadd.f32 0.0, %v240
        %242 = vmatmul.f32.gmra.mxu0 %v176
        %v243 = vpop.f32.mrf.mxu0
        %v244 = vadd.f32 0.0, %v243
        %245 = vmatmul.f32.gmra.mxu0 %v177
        %v246 = vpop.f32.mrf.mxu0
        %v247 = vadd.f32 0.0, %v246
        %248 = vmatmul.f32.gmra.mxu0 %v178
        %v249 = vpop.f32.mrf.mxu0
        %v250 = vadd.f32 0.0, %v249
        %251 = vmatmul.f32.gmra.mxu0 %v179
        %v252 = vpop.f32.mrf.mxu0
        %v253 = vadd.f32 0.0, %v252
        %254 = vmatmul.f32.gmra.mxu0 %v180
        %v255 = vpop.f32.mrf.mxu0
        %v256 = vadd.f32 0.0, %v255
        %257 = vmatmul.f32.gmra.mxu0 %v181
        %v258 = vpop.f32.mrf.mxu0
        %v259 = vadd.f32 0.0, %v258
        %260 = vmatmul.f32.gmra.mxu0 %v182
        %v261 = vpop.f32.mrf.mxu0
        %v262 = vadd.f32 0.0, %v261
        %263 = vmatmul.f32.gmra.mxu0 %v183
        %v264 = vpop.f32.mrf.mxu0
        %v265 = vadd.f32 0.0, %v264
        %266 = vmatmul.f32.gmra.mxu0 %v184
        %v267 = vpop.f32.mrf.mxu0
        %v268 = vadd.f32 0.0, %v267
        %269 = vmatmul.f32.gmra.mxu0 %v185
        %v270 = vpop.f32.mrf.mxu0
        %v271 = vadd.f32 0.0, %v270
        %272 = vmatmul.f32.gmra.mxu0 %v186
        %v273 = vpop.f32.mrf.mxu0
        %v274 = vadd.f32 0.0, %v273
        %275 = vmatmul.f32.gmra.mxu0 %v187
        %v276 = vpop.f32.mrf.mxu0
        %v277 = vadd.f32 0.0, %v276
        %278 = vmatmul.f32.gmra.mxu0 %v188
        %v279 = vpop.f32.mrf.mxu0
        %v280 = vadd.f32 0.0, %v279
        %281 = vmatmul.f32.gmra.mxu0 %v189
        %v282 = vpop.f32.mrf.mxu0
        %v283 = vadd.f32 0.0, %v282
        %284 = vmatmul.f32.gmra.mxu0 %v190
        %v285 = vpop.f32.mrf.mxu0
        %v286 = vadd.f32 0.0, %v285
        %287 = vmatmul.f32.gmra.mxu0 %v191
        %v288 = vpop.f32.mrf.mxu0
        %v289 = vadd.f32 0.0, %v288
        %290 = vmatmul.f32.gmra.mxu0 %v192
        %v291 = vpop.f32.mrf.mxu0
        %v292 = vadd.f32 0.0, %v291
        %293 = vmatmul.f32.gmra.mxu0 %v193
        %v294 = vpop.f32.mrf.mxu0
        %v295 = vadd.f32 0.0, %v294
        %296 = vmatmul.f32.gmra.mxu0 %v194
        %v297 = vpop.f32.mrf.mxu0
        %v298 = vadd.f32 0.0, %v297
        %299 = vmatmul.f32.gmra.mxu0 %v195
        %v300 = vpop.f32.mrf.mxu0
        %v301 = vadd.f32 0.0, %v300
        %302 = vmatmul.f32.gmra.mxu0 %v196
        %v303 = vpop.f32.mrf.mxu0
        %v304 = vadd.f32 0.0, %v303
        %305 = vmatmul.f32.gmra.mxu0 %v197
        %v306 = vpop.f32.mrf.mxu0
        %v307 = vadd.f32 0.0, %v306
        %308 = vmatmul.f32.gmra.mxu0 %v198
        %v309 = vpop.f32.mrf.mxu0
        %v310 = vadd.f32 0.0, %v309
        %311 = vmatmul.f32.gmra.mxu0 %v199
        %v312 = vpop.f32.mrf.mxu0
        %v313 = vadd.f32 0.0, %v312
        %314 = vmatmul.f32.gmra.mxu0 %v200
        %v315 = vpop.f32.mrf.mxu0
        %v316 = vadd.f32 0.0, %v315
        %317 = vmatmul.f32.gmra.mxu0 %v201
        %v318 = vpop.f32.mrf.mxu0
        %v319 = vadd.f32 0.0, %v318
        %320 = vmatmul.f32.gmra.mxu0 %v202
        %v321 = vpop.f32.mrf.mxu0
        %v322 = vadd.f32 0.0, %v321
        %323 = vmatmul.f32.gmra.mxu0 %v203
        %v324 = vpop.f32.mrf.mxu0
        %v325 = vadd.f32 0.0, %v324
        %326 = vmatmul.f32.gmra.mxu0 %v204
        %v327 = vpop.f32.mrf.mxu0
        %v328 = vadd.f32 0.0, %v327
        %329 = vmatmul.f32.gmra.mxu0 %v205
        %v330 = vpop.f32.mrf.mxu0
        %v331 = vadd.f32 0.0, %v330
        %332 = vmatmul.f32.gmra.mxu0 %v206
        %v333 = vpop.f32.mrf.mxu0
        %v334 = vadd.f32 0.0, %v333
        %335 = vdwg.mxu0
        %v336 = vadd.f32 %v241, %v244
        %v337 = vadd.f32 %v336, %v247
        %v338 = vadd.f32 %v337, %v250
        %v339 = vadd.f32 %v338, %v253
        %v340 = vadd.f32 %v339, %v256
        %v341 = vadd.f32 %v340, %v259
        %v342 = vadd.f32 %v341, %v262
        %v343 = vadd.f32 %v342, %v265
        %v344 = vadd.f32 %v343, %v268
        %v345 = vadd.f32 %v344, %v271
        %v346 = vadd.f32 %v345, %v274
        %v347 = vadd.f32 %v346, %v277
        %v348 = vadd.f32 %v347, %v280
        %v349 = vadd.f32 %v348, %v283
        %v350 = vadd.f32 %v349, %v286
        %v351 = vadd.f32 %v350, %v289
        %v352 = vadd.f32 %v351, %v292
        %v353 = vadd.f32 %v352, %v295
        %v354 = vadd.f32 %v353, %v298
        %v355 = vadd.f32 %v354, %v301
        %v356 = vadd.f32 %v355, %v304
        %v357 = vadd.f32 %v356, %v307
        %v358 = vadd.f32 %v357, %v310
        %v359 = vadd.f32 %v358, %v313
        %v360 = vadd.f32 %v359, %v316
        %v361 = vadd.f32 %v360, %v319
        %v362 = vadd.f32 %v361, %v322
        %v363 = vadd.f32 %v362, %v325
        %v364 = vadd.f32 %v363, %v328
        %v365 = vadd.f32 %v364, %v331
        %v366 = vadd.f32 %v365, %v334
        %v367 = vrot.slane %v366, 4
        %v368 = vadd.f32 %v366, %v367
        %v369 = vrot.slane %v368, 2
        %v370 = vadd.f32 %v368, %v369
        %v371 = vrot.slane %v370, 1
        %v372 = vadd.f32 %v370, %v371
        %v373 = vmul.f32 %v241, %v241
        %v374 = vmul.f32 %v244, %v244
        %v375 = vmul.f32 %v247, %v247
        %v376 = vmul.f32 %v250, %v250
        %v377 = vmul.f32 %v253, %v253
        %v378 = vmul.f32 %v256, %v256
        %v379 = vmul.f32 %v259, %v259
        %v380 = vmul.f32 %v262, %v262
        %v381 = vmul.f32 %v265, %v265
        %v382 = vmul.f32 %v268, %v268
        %v383 = vmul.f32 %v271, %v271
        %v384 = vmul.f32 %v274, %v274
        %v385 = vmul.f32 %v277, %v277
        %v386 = vmul.f32 %v280, %v280
        %v387 = vmul.f32 %v283, %v283
        %v388 = vmul.f32 %v286, %v286
        %v389 = vmul.f32 %v289, %v289
        %v390 = vmul.f32 %v292, %v292
        %v391 = vmul.f32 %v295, %v295
        %v392 = vmul.f32 %v298, %v298
        %v393 = vmul.f32 %v301, %v301
        %v394 = vmul.f32 %v304, %v304
        %v395 = vmul.f32 %v307, %v307
        %v396 = vmul.f32 %v310, %v310
        %v397 = vmul.f32 %v313, %v313
        %v398 = vmul.f32 %v316, %v316
        %v399 = vmul.f32 %v319, %v319
        %v400 = vmul.f32 %v322, %v322
        %v401 = vmul.f32 %v325, %v325
        %v402 = vmul.f32 %v328, %v328
        %v403 = vmul.f32 %v331, %v331
        %v404 = vmul.f32 %v334, %v334
        %v405 = vadd.f32 %v373, %v374
        %v406 = vadd.f32 %v405, %v375
        %v407 = vadd.f32 %v406, %v376
        %v408 = vadd.f32 %v407, %v377
        %v409 = vadd.f32 %v408, %v378
        %v410 = vadd.f32 %v409, %v379
        %v411 = vadd.f32 %v410, %v380
        %v412 = vadd.f32 %v411, %v381
        %v413 = vadd.f32 %v412, %v382
        %v414 = vadd.f32 %v413, %v383
        %v415 = vadd.f32 %v414, %v384
        %v416 = vadd.f32 %v415, %v385
        %v417 = vadd.f32 %v416, %v386
        %v418 = vadd.f32 %v417, %v387
        %v419 = vadd.f32 %v418, %v388
        %v420 = vadd.f32 %v419, %v389
        %v421 = vadd.f32 %v420, %v390
        %v422 = vadd.f32 %v421, %v391
        %v423 = vadd.f32 %v422, %v392
        %v424 = vadd.f32 %v423, %v393
        %v425 = vadd.f32 %v424, %v394
        %v426 = vadd.f32 %v425, %v395
        %v427 = vadd.f32 %v426, %v396
        %v428 = vadd.f32 %v427, %v397
        %v429 = vadd.f32 %v428, %v398
        %v430 = vadd.f32 %v429, %v399
        %v431 = vadd.f32 %v430, %v400
        %v432 = vadd.f32 %v431, %v401
        %v433 = vadd.f32 %v432, %v402
        %v434 = vadd.f32 %v433, %v403
        %v435 = vadd.f32 %v434, %v404
        %v436 = vrot.slane %v435, 4
        %v437 = vadd.f32 %v435, %v436
        %v438 = vrot.slane %v437, 2
        %v439 = vadd.f32 %v437, %v438
        %v440 = vrot.slane %v439, 1
        %v441 = vadd.f32 %v439, %v440
        %v442 = vld [vmem:[#allocation7] sm:$0x3]
        %vm443 = vcmask 1040384
        %v444 = vsel %vm443, %v372, %v441
        %v445 = vadd.f32 %v442, %v444
        %446 = vst [vmem:[#allocation7] sm:$0x3] %v445
        // Predicated region
        $region41: #{tpu_custom_call.1} parent=27 // pred_check
          %p447 = pneg %p78
        $region42: #{tpu_custom_call.1} parent=27 // pred_check_branch
          %449 = sbr.rel (%p447) target = $region44
        $region43: #{tpu_custom_call.1} parent=27 // pred_region
          %451 = vsyncadd [#allocation4], 0
          %s453 = sshll.u32 [#allocation7], 4
          %s454 = int_to_ptr.vmem [resolvable:$true] %s453
          %s455 = sshll.u32 %s2, 4
          %s456 = int_to_ptr.hbm [resolvable:$true] %s455
          %458 = dma.vmem_to_hbm [thread:$0]  %s454, 32, %s456, [#allocation4]
        $region44: #{tpu_custom_call.1} parent=27 // pred_fallthru
          _
        // Predicated region
        $region45: #{tpu_custom_call.1} parent=27 // pred_check
          %p459 = pneg %p78
        $region46: #{tpu_custom_call.1} parent=27 // pred_check_branch
          %461 = sbr.rel (%p459) target = $region48
        $region47: #{tpu_custom_call.1} parent=27 // pred_region
          %463 = dma.done [#allocation4], 32
        $region48: #{tpu_custom_call.1} parent=27 // pred_fallthru
          _
      $region28: #{tpu_custom_call.1} parent=5 // pred_fallthru
        _
      %p464 = scmp.le.s32.totalorder 2, %s13
      // Predicated region
      $region49: #{tpu_custom_call.1} parent=5 // pred_check
        %p465 = pneg %p464
      $region50: #{tpu_custom_call.1} parent=5 // pred_check_branch
        %467 = sbr.rel (%p465) target = $region52
      $region51: #{tpu_custom_call.1} parent=5 // pred_region
        %s468 = ssub.s32 %s13, 2
      $region52: #{tpu_custom_call.1} parent=5 // pred_fallthru
        _
    $region6: #{tpu_custom_call.1} parent=1 // loop_footer
      %s17 = sadd.s32 1, %s13
    $region7: #{tpu_custom_call.1} parent=1 // loop_footer_branch
      %12 = sbr.rel target = $region3
    $region8: #{tpu_custom_call.1} parent=1 // loop_exit
      _
    %469 = vsyncpa [#allocation3], 1
    %s470 = scalar_lea.sflag [#allocation3], 1
    %471 = vsyncpa %s470, 1
    %472 = vsyncpa [#allocation6], 1
    %473 = vsyncpa [#allocation4], 1
    %s474 = scalar_lea.sflag [#allocation4], 1
    %475 = vsyncpa %s474, 1

</llo_original>
